<compile_context>
chip_gen: v7x
topology: tpu7x:2x2x1
jax: 0.10.0
libtpu: 0.0.40
codegen_flags: <defaults>
</compile_context>

<pallas_src>
import functools

import jax
import jax.numpy as jnp
import numpy as np
from jax.experimental import pallas as pl
from jax.experimental.pallas import tpu as pltpu


def _round_up(x, m):
    return (x + m - 1) // m * m


def _cdiv(a, b):
    return (a + b - 1) // b


def _mlp_embed_kernel(idx_ref, tab1e_ref, tab1p_ref, b1_ref, w2_ref, b2_ref,
                      o_ref, *, le, lp):
    # idx_ref : (TILE_B, L_pad) int32   -- [entity ids | pattern ids | pad]
    # tab1e_ref / tab1p_ref : (V_pad, H_pad) f32 layer-1-fused tables (VMEM)
    idx = idx_ref[...]
    tile_b = idx.shape[0]
    v_pad = tab1e_ref.shape[0]

    # Lane iota over the (padded) vocab axis; counts[b, v] = #tokens == v.
    lane = jax.lax.broadcasted_iota(jnp.int32, (tile_b, v_pad), 1)

    def counts_f32(start, length):
        # Accumulate the boolean compares in int32, convert to f32 once.
        cnt = jnp.zeros((tile_b, v_pad), jnp.int32)
        for l in range(length):                 # static, small token count
            cnt = cnt + (idx[:, start + l:start + l + 1] == lane)
        return cnt.astype(jnp.float32)

    # Entity: build counts and consume them immediately (MXU matmul), then
    # pattern -- never both (tile_b, V_pad) counts tiles live at once.
    h = jnp.dot(counts_f32(0, le), tab1e_ref[...],
                preferred_element_type=jnp.float32)
    h = h + jnp.dot(counts_f32(le, lp), tab1p_ref[...],
                    preferred_element_type=jnp.float32)

    # Bias + ReLU, then layer 2 -> lane-dense (TILE_B, O_pad) store.
    h = jnp.maximum(h + b1_ref[...], 0.0)
    o_ref[...] = (jnp.dot(h, w2_ref[...], preferred_element_type=jnp.float32)
                  + b2_ref[...])


def feedforward_mlp_embed(entity, pattern, params, *, tile_b=None):
    """Forward pass matching FeedForwardMLPEmbed.forward."""
    ent_table = params["entity_embeddings"].astype(jnp.float32)  # (V, E)
    pat_table = params["pat_embeddings"].astype(jnp.float32)     # (V, E)
    w1 = params["w1"].astype(jnp.float32)                        # (2E, H)
    b1 = params["b1"].astype(jnp.float32)                        # (H,)
    w2 = params["w2"].astype(jnp.float32)                        # (H, O)
    b2 = params["b2"].astype(jnp.float32)                        # (O,)

    B, Le = entity.shape
    V, E = ent_table.shape
    H = w1.shape[1]
    O = w2.shape[1]

    pattern_flat = pattern.reshape(B, -1).astype(jnp.int32)
    Lp = pattern_flat.shape[1]
    entity = entity.astype(jnp.int32)

    # ---- lane / sublane alignment (zero padding, sliced off afterwards) ----
    V_pad = _round_up(V, 128)
    H_pad = _round_up(H, 128)
    O_pad = _round_up(O, 128)
    L_pad = _round_up(Le + Lp, 128)

    if tile_b is None:
        # ~128 rows/step max, and >=2 grid steps whenever B allows it so the
        # "parallel" batch axis spans both TensorCores on v7x.
        tile_b = max(8, min(128, _round_up(_cdiv(B, 2), 8)))
    B_pad = _round_up(B, tile_b)
    grid = (B_pad // tile_b,)

    # ---- host-side algebraic fusion of layer 1 into the tables ----
    # mean(tab[idx]) @ W1_half == counts @ (tab @ W1_half / L); removes two
    # in-kernel matmuls and keeps only (V_pad, H_pad) tables VMEM-resident.
    # (Weights are static per call; for repeated reuse, cache these products.)
    tab1e = (ent_table * (1.0 / Le)) @ w1[:E, :]                 # (V, H)
    tab1p = (pat_table * (1.0 / Lp)) @ w1[E:, :]                 # (V, H)
    tab1e_p = jnp.zeros((V_pad, H_pad), jnp.float32).at[:V, :H].set(tab1e)
    tab1p_p = jnp.zeros((V_pad, H_pad), jnp.float32).at[:V, :H].set(tab1p)
    b1_p = jnp.zeros((1, H_pad), jnp.float32).at[:, :H].set(b1.reshape(1, H))
    w2_p = jnp.zeros((H_pad, O_pad), jnp.float32).at[:H, :O].set(w2)
    b2_p = jnp.zeros((1, O_pad), jnp.float32).at[:, :O].set(b2.reshape(1, O))

    # Single lane-dense int32 index buffer: [entity | pattern | zero pad].
    # (Pad columns are never read in-kernel; pad rows are sliced off below.)
    idx_p = jnp.zeros((B_pad, L_pad), jnp.int32)
    idx_p = idx_p.at[:B, :Le].set(entity)
    idx_p = idx_p.at[:B, Le:Le + Lp].set(pattern_flat)

    # ---- VMEM budget: resident weights + pipelined tiles + intermediates ----
    invariant_bytes = 4 * (2 * V_pad * H_pad + H_pad + H_pad * O_pad + O_pad)
    per_step_bytes = 4 * 2 * (tile_b * L_pad + tile_b * O_pad)  # dbl-buffered
    live_intermediates = 4 * tile_b * (V_pad + 2 * H_pad + O_pad)
    footprint = 2 * invariant_bytes + per_step_bytes + live_intermediates
    vmem_limit_bytes = int(min(max(footprint + (4 << 20), 32 << 20), 56 << 20))

    invariant = dict(pipeline_mode=pl.Buffered(1))   # fetched once, 1 buffer
    in_specs = [
        pl.BlockSpec((tile_b, L_pad), lambda i: (i, 0)),               # idx
        pl.BlockSpec((V_pad, H_pad), lambda i: (0, 0), **invariant),   # ent tab@W1
        pl.BlockSpec((V_pad, H_pad), lambda i: (0, 0), **invariant),   # pat tab@W1
        pl.BlockSpec((1, H_pad), lambda i: (0, 0), **invariant),       # b1
        pl.BlockSpec((H_pad, O_pad), lambda i: (0, 0), **invariant),   # W2
        pl.BlockSpec((1, O_pad), lambda i: (0, 0), **invariant),       # b2
    ]
    out_spec = pl.BlockSpec((tile_b, O_pad), lambda i: (i, 0))

    flops = (2 * B_pad * (2 * V_pad * H_pad + H_pad * O_pad)
             + B_pad * (Le + Lp) * V_pad)
    bytes_accessed = 4 * (B_pad * L_pad + 2 * V_pad * H_pad + H_pad
                          + H_pad * O_pad + O_pad + B_pad * O_pad)
    cost = pl.CostEstimate(flops=flops, transcendentals=0,
                           bytes_accessed=bytes_accessed)

    out_padded = pl.pallas_call(
        functools.partial(_mlp_embed_kernel, le=Le, lp=Lp),
        out_shape=jax.ShapeDtypeStruct((B_pad, O_pad), jnp.float32),
        grid=grid,
        in_specs=in_specs,
        out_specs=out_spec,
        cost_estimate=cost,
        compiler_params=pltpu.CompilerParams(
            dimension_semantics=("parallel",),
            vmem_limit_bytes=vmem_limit_bytes),
    )(idx_p, tab1e_p, tab1p_p, b1_p, w2_p, b2_p)

    return out_padded[:B, :O]


def _reference(entity, pattern, params):
    """Pure-JAX reference mirroring the PyTorch forward exactly."""
    ent_table = params["entity_embeddings"]
    pat_table = params["pat_embeddings"]
    B = entity.shape[0]
    entity_embed = jnp.mean(ent_table[entity], axis=1)
    pattern_flat = pattern.reshape(B, -1)
    pattern_embed = jnp.mean(pat_table[pattern_flat], axis=1)
    concatenated = jnp.concatenate([entity_embed, pattern_embed], axis=1)
    res = concatenated @ params["w1"] + params["b1"]
    res = jnp.maximum(res, 0.0)
    res = res @ params["w2"] + params["b2"]
    return res


def init_params(key, word_vocab_size, embedding_size, hidden_sz, output_sz):
    k_e, k_p, k_w1, k_b1, k_w2, k_b2 = jax.random.split(key, 6)
    # nn.Embedding default: N(0, 1); nn.Linear default: U(-1/sqrt(fan_in), ...)
    lim1 = 1.0 / np.sqrt(embedding_size * 2)
    lim2 = 1.0 / np.sqrt(hidden_sz)
    return {
        "entity_embeddings": jax.random.normal(
            k_e, (word_vocab_size, embedding_size), jnp.float32),
        "pat_embeddings": jax.random.normal(
            k_p, (word_vocab_size, embedding_size), jnp.float32),
        # stored as (in, out) so forward is x @ W + b (== PyTorch x @ W.T + b)
        "w1": jax.random.uniform(k_w1, (embedding_size * 2, hidden_sz),
                                 jnp.float32, -lim1, lim1),
        "b1": jax.random.uniform(k_b1, (hidden_sz,), jnp.float32, -lim1, lim1),
        "w2": jax.random.uniform(k_w2, (hidden_sz, output_sz),
                                 jnp.float32, -lim2, lim2),
        "b2": jax.random.uniform(k_b2, (output_sz,), jnp.float32, -lim2, lim2),
    }


if __name__ == "__main__":
    # small, module-consistent shapes
    word_vocab_size = 32
    embedding_size = 16
    hidden_sz = 32
    output_sz = 8
    batch = 4
    ent_len = 5           # entity: (B, Le) token ids
    pat_shape = (2, 3)    # pattern: (B, 2, 3) token ids, flattened in forward

    key = jax.random.PRNGKey(0)
    k_params, k_ent, k_pat = jax.random.split(key, 3)
    params = init_params(k_params, word_vocab_size, embedding_size,
                         hidden_sz, output_sz)

    entity = jax.random.randint(k_ent, (batch, ent_len), 0, word_vocab_size,
                                dtype=jnp.int32)
    pattern = jax.random.randint(k_pat, (batch,) + pat_shape, 0,
                                 word_vocab_size, dtype=jnp.int32)

    out = jax.block_until_ready(feedforward_mlp_embed(entity, pattern, params))
    ref = jax.block_until_ready(_reference(entity, pattern, params))

    assert out.shape == (batch, output_sz)
    err = np.max(np.abs(np.asarray(out) - np.asarray(ref)))
    assert np.allclose(np.asarray(out), np.asarray(ref),
                       atol=1e-4, rtol=1e-4), f"max abs err {err}"

    print("KERNEL_OK")
</pallas_src>

<mosaic_0001>
module attributes {stable_mosaic.version = 11 : i64} {
  func.func @_mlp_embed_kernel(%arg0: i32, %arg1: memref<8x128xi32, #tpu.memory_space<vmem>>, %arg2: memref<128x128xf32, #tpu.memory_space<vmem>>, %arg3: memref<128x128xf32, #tpu.memory_space<vmem>>, %arg4: memref<1x128xf32, #tpu.memory_space<vmem>>, %arg5: memref<128x128xf32, #tpu.memory_space<vmem>>, %arg6: memref<1x128xf32, #tpu.memory_space<vmem>>, %arg7: memref<8x128xf32, #tpu.memory_space<vmem>>) attributes {dimension_semantics = [#tpu.dimension_semantics<parallel>], iteration_bounds = array<i64: 1>, scalar_prefetch = 0 : i64, scratch_operands = 0 : i64, tpu.core_type = #tpu.core_type<tc>, window_params = [{transform_indices = @transform_0, window_bounds = array<i64: 8, 128>}, {pipeline_mode = #tpu.pipeline_mode<synchronous>, transform_indices = @transform_1, window_bounds = array<i64: 128, 128>}, {pipeline_mode = #tpu.pipeline_mode<synchronous>, transform_indices = @transform_2, window_bounds = array<i64: 128, 128>}, {pipeline_mode = #tpu.pipeline_mode<synchronous>, transform_indices = @transform_3, window_bounds = array<i64: 1, 128>}, {pipeline_mode = #tpu.pipeline_mode<synchronous>, transform_indices = @transform_4, window_bounds = array<i64: 128, 128>}, {pipeline_mode = #tpu.pipeline_mode<synchronous>, transform_indices = @transform_5, window_bounds = array<i64: 1, 128>}, {transform_indices = @transform_6, window_bounds = array<i64: 8, 128>}]} {
    %c0 = arith.constant 0 : index
    %c0_0 = arith.constant 0 : index
    %0 = vector.load %arg1[%c0, %c0_0] : memref<8x128xi32, #tpu.memory_space<vmem>>, vector<8x128xi32>
    %1 = tpu.iota {dimensions = array<i32: 1>} : vector<8x128xi32>
    %c0_i32 = arith.constant 0 : i32
    %2 = vector.broadcast %c0_i32 : i32 to vector<8x128xi32>
    %3 = vector.extract_strided_slice %0 {offsets = [0, 0], sizes = [8, 1], strides = [1, 1]} : vector<8x128xi32> to vector<8x1xi32>
    %4 = vector.broadcast %3 : vector<8x1xi32> to vector<8x128xi32>
    %5 = arith.cmpi eq, %4, %1 : vector<8x128xi32>
    %6 = arith.extui %5 : vector<8x128xi1> to vector<8x128xi32>
    %7 = arith.addi %2, %6 : vector<8x128xi32>
    %8 = vector.extract_strided_slice %0 {offsets = [0, 1], sizes = [8, 1], strides = [1, 1]} : vector<8x128xi32> to vector<8x1xi32>
    %9 = vector.broadcast %8 : vector<8x1xi32> to vector<8x128xi32>
    %10 = arith.cmpi eq, %9, %1 : vector<8x128xi32>
    %11 = arith.extui %10 : vector<8x128xi1> to vector<8x128xi32>
    %12 = arith.addi %7, %11 : vector<8x128xi32>
    %13 = vector.extract_strided_slice %0 {offsets = [0, 2], sizes = [8, 1], strides = [1, 1]} : vector<8x128xi32> to vector<8x1xi32>
    %14 = vector.broadcast %13 : vector<8x1xi32> to vector<8x128xi32>
    %15 = arith.cmpi eq, %14, %1 : vector<8x128xi32>
    %16 = arith.extui %15 : vector<8x128xi1> to vector<8x128xi32>
    %17 = arith.addi %12, %16 : vector<8x128xi32>
    %18 = vector.extract_strided_slice %0 {offsets = [0, 3], sizes = [8, 1], strides = [1, 1]} : vector<8x128xi32> to vector<8x1xi32>
    %19 = vector.broadcast %18 : vector<8x1xi32> to vector<8x128xi32>
    %20 = arith.cmpi eq, %19, %1 : vector<8x128xi32>
    %21 = arith.extui %20 : vector<8x128xi1> to vector<8x128xi32>
    %22 = arith.addi %17, %21 : vector<8x128xi32>
    %23 = vector.extract_strided_slice %0 {offsets = [0, 4], sizes = [8, 1], strides = [1, 1]} : vector<8x128xi32> to vector<8x1xi32>
    %24 = vector.broadcast %23 : vector<8x1xi32> to vector<8x128xi32>
    %25 = arith.cmpi eq, %24, %1 : vector<8x128xi32>
    %26 = arith.extui %25 : vector<8x128xi1> to vector<8x128xi32>
    %27 = arith.addi %22, %26 : vector<8x128xi32>
    %28 = arith.sitofp %27 : vector<8x128xi32> to vector<8x128xf32>
    %c0_1 = arith.constant 0 : index
    %c0_2 = arith.constant 0 : index
    %29 = vector.load %arg2[%c0_1, %c0_2] : memref<128x128xf32, #tpu.memory_space<vmem>>, vector<128x128xf32>
    %cst = arith.constant dense<0.000000e+00> : vector<8x128xf32>
    %30 = tpu.matmul %28, %29, %cst {dimension_numbers = #tpu.dot_dimension_numbers<[1], [0], [0], [1], [0, 0, 1, 1], [], []>} : vector<8x128xf32>, vector<128x128xf32>, vector<8x128xf32> -> vector<8x128xf32>
    %c0_i32_3 = arith.constant 0 : i32
    %31 = vector.broadcast %c0_i32_3 : i32 to vector<8x128xi32>
    %32 = vector.extract_strided_slice %0 {offsets = [0, 5], sizes = [8, 1], strides = [1, 1]} : vector<8x128xi32> to vector<8x1xi32>
    %33 = vector.broadcast %32 : vector<8x1xi32> to vector<8x128xi32>
    %34 = arith.cmpi eq, %33, %1 : vector<8x128xi32>
    %35 = arith.extui %34 : vector<8x128xi1> to vector<8x128xi32>
    %36 = arith.addi %31, %35 : vector<8x128xi32>
    %37 = vector.extract_strided_slice %0 {offsets = [0, 6], sizes = [8, 1], strides = [1, 1]} : vector<8x128xi32> to vector<8x1xi32>
    %38 = vector.broadcast %37 : vector<8x1xi32> to vector<8x128xi32>
    %39 = arith.cmpi eq, %38, %1 : vector<8x128xi32>
    %40 = arith.extui %39 : vector<8x128xi1> to vector<8x128xi32>
    %41 = arith.addi %36, %40 : vector<8x128xi32>
    %42 = vector.extract_strided_slice %0 {offsets = [0, 7], sizes = [8, 1], strides = [1, 1]} : vector<8x128xi32> to vector<8x1xi32>
    %43 = vector.broadcast %42 : vector<8x1xi32> to vector<8x128xi32>
    %44 = arith.cmpi eq, %43, %1 : vector<8x128xi32>
    %45 = arith.extui %44 : vector<8x128xi1> to vector<8x128xi32>
    %46 = arith.addi %41, %45 : vector<8x128xi32>
    %47 = vector.extract_strided_slice %0 {offsets = [0, 8], sizes = [8, 1], strides = [1, 1]} : vector<8x128xi32> to vector<8x1xi32>
    %48 = vector.broadcast %47 : vector<8x1xi32> to vector<8x128xi32>
    %49 = arith.cmpi eq, %48, %1 : vector<8x128xi32>
    %50 = arith.extui %49 : vector<8x128xi1> to vector<8x128xi32>
    %51 = arith.addi %46, %50 : vector<8x128xi32>
    %52 = vector.extract_strided_slice %0 {offsets = [0, 9], sizes = [8, 1], strides = [1, 1]} : vector<8x128xi32> to vector<8x1xi32>
    %53 = vector.broadcast %52 : vector<8x1xi32> to vector<8x128xi32>
    %54 = arith.cmpi eq, %53, %1 : vector<8x128xi32>
    %55 = arith.extui %54 : vector<8x128xi1> to vector<8x128xi32>
    %56 = arith.addi %51, %55 : vector<8x128xi32>
    %57 = vector.extract_strided_slice %0 {offsets = [0, 10], sizes = [8, 1], strides = [1, 1]} : vector<8x128xi32> to vector<8x1xi32>
    %58 = vector.broadcast %57 : vector<8x1xi32> to vector<8x128xi32>
    %59 = arith.cmpi eq, %58, %1 : vector<8x128xi32>
    %60 = arith.extui %59 : vector<8x128xi1> to vector<8x128xi32>
    %61 = arith.addi %56, %60 : vector<8x128xi32>
    %62 = arith.sitofp %61 : vector<8x128xi32> to vector<8x128xf32>
    %c0_4 = arith.constant 0 : index
    %c0_5 = arith.constant 0 : index
    %63 = vector.load %arg3[%c0_4, %c0_5] : memref<128x128xf32, #tpu.memory_space<vmem>>, vector<128x128xf32>
    %cst_6 = arith.constant dense<0.000000e+00> : vector<8x128xf32>
    %64 = tpu.matmul %62, %63, %cst_6 {dimension_numbers = #tpu.dot_dimension_numbers<[1], [0], [0], [1], [0, 0, 1, 1], [], []>} : vector<8x128xf32>, vector<128x128xf32>, vector<8x128xf32> -> vector<8x128xf32>
    %65 = arith.addf %30, %64 : vector<8x128xf32>
    %c0_7 = arith.constant 0 : index
    %c0_8 = arith.constant 0 : index
    %66 = vector.load %arg4[%c0_7, %c0_8] : memref<1x128xf32, #tpu.memory_space<vmem>>, vector<1x128xf32>
    %67 = vector.broadcast %66 : vector<1x128xf32> to vector<8x128xf32>
    %68 = arith.addf %65, %67 : vector<8x128xf32>
    %cst_9 = arith.constant 0.000000e+00 : f32
    %69 = vector.broadcast %cst_9 : f32 to vector<8x128xf32>
    %70 = arith.maximumf %68, %69 : vector<8x128xf32>
    %c0_10 = arith.constant 0 : index
    %c0_11 = arith.constant 0 : index
    %71 = vector.load %arg5[%c0_10, %c0_11] : memref<128x128xf32, #tpu.memory_space<vmem>>, vector<128x128xf32>
    %cst_12 = arith.constant dense<0.000000e+00> : vector<8x128xf32>
    %72 = tpu.matmul %70, %71, %cst_12 {dimension_numbers = #tpu.dot_dimension_numbers<[1], [0], [0], [1], [0, 0, 1, 1], [], []>} : vector<8x128xf32>, vector<128x128xf32>, vector<8x128xf32> -> vector<8x128xf32>
    %c0_13 = arith.constant 0 : index
    %c0_14 = arith.constant 0 : index
    %73 = vector.load %arg6[%c0_13, %c0_14] : memref<1x128xf32, #tpu.memory_space<vmem>>, vector<1x128xf32>
    %74 = vector.broadcast %73 : vector<1x128xf32> to vector<8x128xf32>
    %75 = arith.addf %72, %74 : vector<8x128xf32>
    %c0_15 = arith.constant 0 : index
    %c0_16 = arith.constant 0 : index
    %76 = vector.load %arg7[%c0_15, %c0_16] : memref<8x128xf32, #tpu.memory_space<vmem>>, vector<8x128xf32>
    tpu.vector_store %arg7[%c0_15, %c0_16], %75 {strides = array<i32>} : memref<8x128xf32, #tpu.memory_space<vmem>>, vector<8x128xf32>,
    return
  }
  func.func @transform_0(%arg0: i32) -> (i32, i32) {
    %c0_i32 = arith.constant 0 : i32
    %c0_i32_0 = arith.constant 0 : i32
    return %arg0, %c0_i32 : i32, i32
  }
  func.func @transform_1(%arg0: i32) -> (i32, i32) {
    %c0_i32 = arith.constant 0 : i32
    %c0_i32_0 = arith.constant 0 : i32
    %c0_i32_1 = arith.constant 0 : i32
    return %c0_i32, %c0_i32_0 : i32, i32
  }
  func.func @transform_2(%arg0: i32) -> (i32, i32) {
    %c0_i32 = arith.constant 0 : i32
    %c0_i32_0 = arith.constant 0 : i32
    %c0_i32_1 = arith.constant 0 : i32
    return %c0_i32, %c0_i32_0 : i32, i32
  }
  func.func @transform_3(%arg0: i32) -> (i32, i32) {
    %c0_i32 = arith.constant 0 : i32
    %c0_i32_0 = arith.constant 0 : i32
    %c0_i32_1 = arith.constant 0 : i32
    return %c0_i32, %c0_i32_0 : i32, i32
  }
  func.func @transform_4(%arg0: i32) -> (i32, i32) {
    %c0_i32 = arith.constant 0 : i32
    %c0_i32_0 = arith.constant 0 : i32
    %c0_i32_1 = arith.constant 0 : i32
    return %c0_i32, %c0_i32_0 : i32, i32
  }
  func.func @transform_5(%arg0: i32) -> (i32, i32) {
    %c0_i32 = arith.constant 0 : i32
    %c0_i32_0 = arith.constant 0 : i32
    %c0_i32_1 = arith.constant 0 : i32
    return %c0_i32, %c0_i32_0 : i32, i32
  }
  func.func @transform_6(%arg0: i32) -> (i32, i32) {
    %c0_i32 = arith.constant 0 : i32
    %c0_i32_0 = arith.constant 0 : i32
    return %arg0, %c0_i32 : i32, i32
  }
}

</mosaic_0001>

<llo_original>
// kernel: tpu_custom_call.1
$region0: #{tpu_custom_call.1}
  #allocation0 [shape = 'u32[]', space=smem, size = 0x4, offset = 0x4, fixed_abs, tag = 'smem constant byte address 0x4 - core index']
  #allocation1 [shape = 'u32[144,128]{1,0:T(1,128)}', space=vmem, size = 0x12000, scoped, tag = 'internal scratch']
  %s0 = inlined_call_operand.hbm [shape: s32[8,128], index: 0, kind: input, shape index: {}]
  %s1 = inlined_call_operand.hbm [shape: f32[128,128], index: 1, kind: input, shape index: {}]
  %s2 = inlined_call_operand.hbm [shape: f32[128,128], index: 2, kind: input, shape index: {}]
  %s3 = inlined_call_operand.vmem [shape: f32[1,128], index: 3, kind: input, shape index: {}]
  %s4 = inlined_call_operand.hbm [shape: f32[128,128], index: 4, kind: input, shape index: {}]
  %s5 = inlined_call_operand.vmem [shape: f32[1,128], index: 5, kind: input, shape index: {}]
  %s6 = inlined_call_operand.hbm [shape: f32[8,128], index: 6, kind: output, shape index: {}]
  %s7 = sld [smem:[#allocation0]]
  $region50: #{tpu_custom_call.1} parent=0
    _
  %s9 = ssub.s32 1, %s7
  %s10 = scalar_select 0, %s9, %s7
  $region1: #{tpu_custom_call.1} parent=0
    #allocation2 [shape = 'u8[4096]{0}', space=vmem, size = 0x1000, scoped, tag = 'input window, operand 0, single buffered']
    #allocation3 [shape = 's32[1]{0}', space=sflag, size = 0x4, scoped, tag = 'scoped memory for tpu_custom_call.1']
    #allocation4 [shape = 's32[1]{0}', space=sflag, size = 0x4, scoped, tag = 'scoped memory for tpu_custom_call.1']
    #allocation5 [shape = 'u8[65536]{0}', space=vmem, size = 0x10000, scoped, tag = 'input window, operand 1, single buffered']
    #allocation6 [shape = 's32[1]{0}', space=sflag, size = 0x4, scoped, tag = 'scoped memory for tpu_custom_call.1']
    #allocation7 [shape = 'u8[65536]{0}', space=vmem, size = 0x10000, scoped, tag = 'input window, operand 2, single buffered']
    #allocation8 [shape = 'u8[65536]{0}', space=vmem, size = 0x10000, scoped, tag = 'input window, operand 4, single buffered']
    #allocation9 [shape = 's32[1]{0}', space=sflag, size = 0x4, scoped, tag = 'scoped memory for tpu_custom_call.1']
    #allocation10 [shape = 'u8[4096]{0}', space=vmem, size = 0x1000, scoped, tag = 'output window, operand 0, single buffered']
    %11 = vsyncpa [#allocation3], 0
    %12 = vsyncpa [#allocation6], 0
    %13 = vsyncpa [#allocation9], 0
    %14 = vsyncpa [#allocation4], 0
    // Predicated region
    $region2: #{tpu_custom_call.1} parent=1 // pred_check
      _
    $region3: #{tpu_custom_call.1} parent=1 // pred_check_branch
      %16 = sbr.rel (0) target = $region5
    $region4: #{tpu_custom_call.1} parent=1 // pred_region
      %s18 = ssub.s32 128, 128
      %19 = vsyncadd [#allocation3], %s18
      %s21 = sshll.u32 [#allocation2], 4
      %s22 = int_to_ptr.vmem [resolvable:$true] %s21
      %24 = dma.hbm_to_vmem [thread:$0]  %s0, 128, %s22, [#allocation3]
    $region5: #{tpu_custom_call.1} parent=1 // pred_fallthru
      _
    // Predicated region
    $region6: #{tpu_custom_call.1} parent=1 // pred_check
      _
    $region7: #{tpu_custom_call.1} parent=1 // pred_check_branch
      %26 = sbr.rel (0) target = $region9
    $region8: #{tpu_custom_call.1} parent=1 // pred_region
      %s28 = ssub.s32 2048, 2048
      %29 = vsyncadd [#allocation6], %s28
      %s30 = sshll.u32 [#allocation5], 4
      %s31 = int_to_ptr.vmem [resolvable:$true] %s30
      %36 = dma.hbm_to_vmem [thread:$0]  %s1, 2048, %s31, [#allocation6], 128, 128, 8
    $region9: #{tpu_custom_call.1} parent=1 // pred_fallthru
      _
    // Predicated region
    $region10: #{tpu_custom_call.1} parent=1 // pred_check
      _
    $region11: #{tpu_custom_call.1} parent=1 // pred_check_branch
      %38 = sbr.rel (0) target = $region13
    $region12: #{tpu_custom_call.1} parent=1 // pred_region
      %s40 = ssub.s32 2048, 2048
      %41 = vsyncadd [#allocation6], %s40
      %s42 = sshll.u32 [#allocation7], 4
      %s43 = int_to_ptr.vmem [resolvable:$true] %s42
      %48 = dma.hbm_to_vmem [thread:$0]  %s2, 2048, %s43, [#allocation6], 128, 128, 8
    $region13: #{tpu_custom_call.1} parent=1 // pred_fallthru
      _
    // Predicated region
    $region14: #{tpu_custom_call.1} parent=1 // pred_check
      _
    $region15: #{tpu_custom_call.1} parent=1 // pred_check_branch
      %50 = sbr.rel (0) target = $region17
    $region16: #{tpu_custom_call.1} parent=1 // pred_region
      _
    $region17: #{tpu_custom_call.1} parent=1 // pred_fallthru
      _
    // Predicated region
    $region18: #{tpu_custom_call.1} parent=1 // pred_check
      _
    $region19: #{tpu_custom_call.1} parent=1 // pred_check_branch
      %52 = sbr.rel (0) target = $region21
    $region20: #{tpu_custom_call.1} parent=1 // pred_region
      %s54 = ssub.s32 2048, 2048
      %55 = vsyncadd [#allocation9], %s54
      %s56 = sshll.u32 [#allocation8], 4
      %s57 = int_to_ptr.vmem [resolvable:$true] %s56
      %62 = dma.hbm_to_vmem [thread:$0]  %s4, 2048, %s57, [#allocation9], 128, 128, 8
    $region21: #{tpu_custom_call.1} parent=1 // pred_fallthru
      _
    // Predicated region
    $region22: #{tpu_custom_call.1} parent=1 // pred_check
      _
    $region23: #{tpu_custom_call.1} parent=1 // pred_check_branch
      %64 = sbr.rel (0) target = $region25
    $region24: #{tpu_custom_call.1} parent=1 // pred_region
      _
    $region25: #{tpu_custom_call.1} parent=1 // pred_fallthru
      _
    // Predicated region
    $region26: #{tpu_custom_call.1} parent=1 // pred_check
      _
    $region27: #{tpu_custom_call.1} parent=1 // pred_check_branch
      %66 = sbr.rel (0) target = $region29
    $region28: #{tpu_custom_call.1} parent=1 // pred_region
      %67 = dma.done [#allocation3], 128
    $region29: #{tpu_custom_call.1} parent=1 // pred_fallthru
      _
    // Predicated region
    $region30: #{tpu_custom_call.1} parent=1 // pred_check
      _
    $region31: #{tpu_custom_call.1} parent=1 // pred_check_branch
      %69 = sbr.rel (0) target = $region33
    $region32: #{tpu_custom_call.1} parent=1 // pred_region
      %70 = dma.done [#allocation6], 2048
    $region33: #{tpu_custom_call.1} parent=1 // pred_fallthru
      _
    // Predicated region
    $region34: #{tpu_custom_call.1} parent=1 // pred_check
      _
    $region35: #{tpu_custom_call.1} parent=1 // pred_check_branch
      %72 = sbr.rel (0) target = $region37
    $region36: #{tpu_custom_call.1} parent=1 // pred_region
      %73 = dma.done [#allocation6], 2048
    $region37: #{tpu_custom_call.1} parent=1 // pred_fallthru
      _
    // Predicated region
    $region38: #{tpu_custom_call.1} parent=1 // pred_check
      _
    $region39: #{tpu_custom_call.1} parent=1 // pred_check_branch
      %75 = sbr.rel (0) target = $region41
    $region40: #{tpu_custom_call.1} parent=1 // pred_region
      %76 = dma.done [#allocation9], 2048
    $region41: #{tpu_custom_call.1} parent=1 // pred_fallthru
      _
    %v77 = vld [vmem:[#allocation2] sm:$0xff]
    %v78 = vlaneseq
    %v79 = vand.u32 %v78, 127
    %80 = vset.pattern.permute.xlu0 0
    %81 = vperm.xlu0 %80, %v77
    %v82 = vpop.permute.xlu0 %81
    %vm83 = vcmp.eq.s32.totalorder %v82, %v79
    %v84 = vsel %vm83, 1, 0
    %85 = vset.pattern.permute.xlu0 1
    %86 = vperm.xlu0 %85, %v77
    %v87 = vpop.permute.xlu0 %86
    %vm88 = vcmp.eq.s32.totalorder %v87, %v79
    %v89 = vsel %vm88, 1, 0
    %v90 = vadd.s32 %v84, %v89
    %91 = vset.pattern.permute.xlu0 2
    %92 = vperm.xlu0 %91, %v77
    %v93 = vpop.permute.xlu0 %92
    %vm94 = vcmp.eq.s32.totalorder %v93, %v79
    %v95 = vsel %vm94, 1, 0
    %v96 = vadd.s32 %v90, %v95
    %97 = vset.pattern.permute.xlu0 3
    %98 = vperm.xlu0 %97, %v77
    %v99 = vpop.permute.xlu0 %98
    %vm100 = vcmp.eq.s32.totalorder %v99, %v79
    %v101 = vsel %vm100, 1, 0
    %v102 = vadd.s32 %v96, %v101
    %103 = vset.pattern.permute.xlu0 4
    %104 = vperm.xlu0 %103, %v77
    %v105 = vpop.permute.xlu0 %104
    %vm106 = vcmp.eq.s32.totalorder %v105, %v79
    %v107 = vsel %vm106, 1, 0
    %v108 = vadd.s32 %v102, %v107
    %v109 = vcvt.s32.f32 %v108
    %v110 = vld [vmem:[#allocation5] sm:$0xff]
    %v111 = vld [vmem:[#allocation5 + $0x8] sm:$0xff]
    %v112 = vld [vmem:[#allocation5 + $0x10] sm:$0xff]
    %v113 = vld [vmem:[#allocation5 + $0x18] sm:$0xff]
    %v114 = vld [vmem:[#allocation5 + $0x20] sm:$0xff]
    %v115 = vld [vmem:[#allocation5 + $0x28] sm:$0xff]
    %v116 = vld [vmem:[#allocation5 + $0x30] sm:$0xff]
    %v117 = vld [vmem:[#allocation5 + $0x38] sm:$0xff]
    %v118 = vld [vmem:[#allocation5 + $0x40] sm:$0xff]
    %v119 = vld [vmem:[#allocation5 + $0x48] sm:$0xff]
    %v120 = vld [vmem:[#allocation5 + $0x50] sm:$0xff]
    %v121 = vld [vmem:[#allocation5 + $0x58] sm:$0xff]
    %v122 = vld [vmem:[#allocation5 + $0x60] sm:$0xff]
    %v123 = vld [vmem:[#allocation5 + $0x68] sm:$0xff]
    %v124 = vld [vmem:[#allocation5 + $0x70] sm:$0xff]
    %v125 = vld [vmem:[#allocation5 + $0x78] sm:$0xff]
    %126 = vset.pattern.permute.xlu0 5
    %127 = vperm.xlu0 %126, %v77
    %v128 = vpop.permute.xlu0 %127
    %vm129 = vcmp.eq.s32.totalorder %v128, %v79
    %v130 = vsel %vm129, 1, 0
    %131 = vset.pattern.permute.xlu0 6
    %132 = vperm.xlu0 %131, %v77
    %v133 = vpop.permute.xlu0 %132
    %vm134 = vcmp.eq.s32.totalorder %v133, %v79
    %v135 = vsel %vm134, 1, 0
    %v136 = vadd.s32 %v130, %v135
    %137 = vset.pattern.permute.xlu0 7
    %138 = vperm.xlu0 %137, %v77
    %v139 = vpop.permute.xlu0 %138
    %vm140 = vcmp.eq.s32.totalorder %v139, %v79
    %v141 = vsel %vm140, 1, 0
    %v142 = vadd.s32 %v136, %v141
    %143 = vset.pattern.permute.xlu0 8
    %144 = vperm.xlu0 %143, %v77
    %v145 = vpop.permute.xlu0 %144
    %vm146 = vcmp.eq.s32.totalorder %v145, %v79
    %v147 = vsel %vm146, 1, 0
    %v148 = vadd.s32 %v142, %v147
    %149 = vset.pattern.permute.xlu0 9
    %150 = vperm.xlu0 %149, %v77
    %v151 = vpop.permute.xlu0 %150
    %vm152 = vcmp.eq.s32.totalorder %v151, %v79
    %v153 = vsel %vm152, 1, 0
    %v154 = vadd.s32 %v148, %v153
    %155 = vset.pattern.permute.xlu0 10
    %156 = vperm.xlu0 %155, %v77
    %v157 = vpop.permute.xlu0 %156
    %vm158 = vcmp.eq.s32.totalorder %v157, %v79
    %v159 = vsel %vm158, 1, 0
    %v160 = vadd.s32 %v154, %v159
    %v161 = vcvt.s32.f32 %v160
    %v162 = vld [vmem:[#allocation7] sm:$0xff]
    %v163 = vld [vmem:[#allocation7 + $0x8] sm:$0xff]
    %v164 = vld [vmem:[#allocation7 + $0x10] sm:$0xff]
    %v165 = vld [vmem:[#allocation7 + $0x18] sm:$0xff]
    %v166 = vld [vmem:[#allocation7 + $0x20] sm:$0xff]
    %v167 = vld [vmem:[#allocation7 + $0x28] sm:$0xff]
    %v168 = vld [vmem:[#allocation7 + $0x30] sm:$0xff]
    %v169 = vld [vmem:[#allocation7 + $0x38] sm:$0xff]
    %v170 = vld [vmem:[#allocation7 + $0x40] sm:$0xff]
    %v171 = vld [vmem:[#allocation7 + $0x48] sm:$0xff]
    %v172 = vld [vmem:[#allocation7 + $0x50] sm:$0xff]
    %v173 = vld [vmem:[#allocation7 + $0x58] sm:$0xff]
    %v174 = vld [vmem:[#allocation7 + $0x60] sm:$0xff]
    %v175 = vld [vmem:[#allocation7 + $0x68] sm:$0xff]
    %v176 = vld [vmem:[#allocation7 + $0x70] sm:$0xff]
    %v177 = vld [vmem:[#allocation7 + $0x78] sm:$0xff]
    %178 = vmatprep.subr.mxu0 0.0
    %179 = vmatpush1.msra.mxu0 %v162
    %180 = vmatprep.subr.mxu0 0.0
    %181 = vmatpush1.msra.mxu0 %v163
    %182 = vmatprep.subr.mxu0 0.0
    %183 = vmatpush1.msra.mxu0 %v164
    %184 = vmatprep.subr.mxu0 0.0
    %185 = vmatpush1.msra.mxu0 %v165
    %186 = vmatprep.subr.mxu0 0.0
    %187 = vmatpush1.msra.mxu0 %v166
    %188 = vmatprep.subr.mxu0 0.0
    %189 = vmatpush1.msra.mxu0 %v167
    %190 = vmatprep.subr.mxu0 0.0
    %191 = vmatpush1.msra.mxu0 %v168
    %192 = vmatprep.subr.mxu0 0.0
    %193 = vmatpush1.msra.mxu0 %v169
    %194 = vmatprep.subr.mxu0 0.0
    %195 = vmatpush1.msra.mxu0 %v170
    %196 = vmatprep.subr.mxu0 0.0
    %197 = vmatpush1.msra.mxu0 %v171
    %198 = vmatprep.subr.mxu0 0.0
    %199 = vmatpush1.msra.mxu0 %v172
    %200 = vmatprep.subr.mxu0 0.0
    %201 = vmatpush1.msra.mxu0 %v173
    %202 = vmatprep.subr.mxu0 0.0
    %203 = vmatpush1.msra.mxu0 %v174
    %204 = vmatprep.subr.mxu0 0.0
    %205 = vmatpush1.msra.mxu0 %v175
    %206 = vmatprep.subr.mxu0 0.0
    %207 = vmatpush1.msra.mxu0 %v176
    %208 = vmatprep.subr.mxu0 0.0
    %209 = vmatpush1.msra.mxu0 %v177
    %210 = vmatprep.subr.mxu0 0.0
    %211 = vmatpush1.msra.mxu0 0.0
    %212 = vmatprep.subr.mxu0 0.0
    %213 = vmatpush1.msra.mxu0 0.0
    %214 = vmatprep.subr.mxu0 0.0
    %215 = vmatpush1.msra.mxu0 0.0
    %216 = vmatprep.subr.mxu0 0.0
    %217 = vmatpush1.msra.mxu0 0.0
    %218 = vmatprep.subr.mxu0 0.0
    %219 = vmatpush1.msra.mxu0 0.0
    %220 = vmatprep.subr.mxu0 0.0
    %221 = vmatpush1.msra.mxu0 0.0
    %222 = vmatprep.subr.mxu0 0.0
    %223 = vmatpush1.msra.mxu0 0.0
    %224 = vmatprep.subr.mxu0 0.0
    %225 = vmatpush1.msra.mxu0 0.0
    %226 = vmatprep.subr.mxu0 0.0
    %227 = vmatpush1.msra.mxu0 0.0
    %228 = vmatprep.subr.mxu0 0.0
    %229 = vmatpush1.msra.mxu0 0.0
    %230 = vmatprep.subr.mxu0 0.0
    %231 = vmatpush1.msra.mxu0 0.0
    %232 = vmatprep.subr.mxu0 0.0
    %233 = vmatpush1.msra.mxu0 0.0
    %234 = vmatprep.subr.mxu0 0.0
    %235 = vmatpush1.msra.mxu0 0.0
    %236 = vmatprep.subr.mxu0 0.0
    %237 = vmatpush1.msra.mxu0 0.0
    %238 = vmatprep.subr.mxu0 0.0
    %239 = vmatpush1.msra.mxu0 0.0
    %240 = vmatprep.subr.mxu0 0.0
    %241 = vmatpush1.msra.mxu0 0.0
    %242 = vmatprep.mubr.f32.mxu0 0.0
    %243 = vmatmul.mubr.f32.gmra.mrb[0].mxu0 %v161
    %v244 = vpop.f32.mrb[0].mxu0
    %v245 = vadd.f32 0.0, %v244
    %v246 = vpop.f32.mrb[0].mxu0
    %247 = vdwg.mxu0
    %248 = vmatprep.subr.mxu0 0.0
    %249 = vmatpush1.msra.mxu0 %v110
    %250 = vmatprep.subr.mxu0 0.0
    %251 = vmatpush1.msra.mxu0 %v111
    %252 = vmatprep.subr.mxu0 0.0
    %253 = vmatpush1.msra.mxu0 %v112
    %254 = vmatprep.subr.mxu0 0.0
    %255 = vmatpush1.msra.mxu0 %v113
    %256 = vmatprep.subr.mxu0 0.0
    %257 = vmatpush1.msra.mxu0 %v114
    %258 = vmatprep.subr.mxu0 0.0
    %259 = vmatpush1.msra.mxu0 %v115
    %260 = vmatprep.subr.mxu0 0.0
    %261 = vmatpush1.msra.mxu0 %v116
    %262 = vmatprep.subr.mxu0 0.0
    %263 = vmatpush1.msra.mxu0 %v117
    %264 = vmatprep.subr.mxu0 0.0
    %265 = vmatpush1.msra.mxu0 %v118
    %266 = vmatprep.subr.mxu0 0.0
    %267 = vmatpush1.msra.mxu0 %v119
    %268 = vmatprep.subr.mxu0 0.0
    %269 = vmatpush1.msra.mxu0 %v120
    %270 = vmatprep.subr.mxu0 0.0
    %271 = vmatpush1.msra.mxu0 %v121
    %272 = vmatprep.subr.mxu0 0.0
    %273 = vmatpush1.msra.mxu0 %v122
    %274 = vmatprep.subr.mxu0 0.0
    %275 = vmatpush1.msra.mxu0 %v123
    %276 = vmatprep.subr.mxu0 0.0
    %277 = vmatpush1.msra.mxu0 %v124
    %278 = vmatprep.subr.mxu0 0.0
    %279 = vmatpush1.msra.mxu0 %v125
    %280 = vmatprep.subr.mxu0 0.0
    %281 = vmatpush1.msra.mxu0 0.0
    %282 = vmatprep.subr.mxu0 0.0
    %283 = vmatpush1.msra.mxu0 0.0
    %284 = vmatprep.subr.mxu0 0.0
    %285 = vmatpush1.msra.mxu0 0.0
    %286 = vmatprep.subr.mxu0 0.0
    %287 = vmatpush1.msra.mxu0 0.0
    %288 = vmatprep.subr.mxu0 0.0
    %289 = vmatpush1.msra.mxu0 0.0
    %290 = vmatprep.subr.mxu0 0.0
    %291 = vmatpush1.msra.mxu0 0.0
    %292 = vmatprep.subr.mxu0 0.0
    %293 = vmatpush1.msra.mxu0 0.0
    %294 = vmatprep.subr.mxu0 0.0
    %295 = vmatpush1.msra.mxu0 0.0
    %296 = vmatprep.subr.mxu0 0.0
    %297 = vmatpush1.msra.mxu0 0.0
    %298 = vmatprep.subr.mxu0 0.0
    %299 = vmatpush1.msra.mxu0 0.0
    %300 = vmatprep.subr.mxu0 0.0
    %301 = vmatpush1.msra.mxu0 0.0
    %302 = vmatprep.subr.mxu0 0.0
    %303 = vmatpush1.msra.mxu0 0.0
    %304 = vmatprep.subr.mxu0 0.0
    %305 = vmatpush1.msra.mxu0 0.0
    %306 = vmatprep.subr.mxu0 0.0
    %307 = vmatpush1.msra.mxu0 0.0
    %308 = vmatprep.subr.mxu0 0.0
    %309 = vmatpush1.msra.mxu0 0.0
    %310 = vmatprep.subr.mxu0 0.0
    %311 = vmatpush1.msra.mxu0 0.0
    %312 = vmatprep.mubr.f32.mxu0 0.0
    %313 = vmatmul.mubr.f32.gmra.mrb[0].mxu0 %v109
    %v314 = vpop.f32.mrb[0].mxu0
    %v315 = vadd.f32 %v245, %v314
    %v316 = vpop.f32.mrb[0].mxu0
    %317 = vdwg.mxu0
    %v318 = vld [vmem:[%s3] sm:$0x1]
    %v320 = vlaneseq
    %v321 = vshrl.u32 %v320, 7
    %v322 = vsub.s32 0, %v321
    %v323 = vrot.slane %v318, %v322
    %v325 = vadd.f32 %v315, %v323
    %v326 = vmax.f32 %v325, 0.0
    %v327 = vld [vmem:[#allocation8] sm:$0xff]
    %v328 = vld [vmem:[#allocation8 + $0x8] sm:$0xff]
    %v329 = vld [vmem:[#allocation8 + $0x10] sm:$0xff]
    %v330 = vld [vmem:[#allocation8 + $0x18] sm:$0xff]
    %v331 = vld [vmem:[#allocation8 + $0x20] sm:$0xff]
    %v332 = vld [vmem:[#allocation8 + $0x28] sm:$0xff]
    %v333 = vld [vmem:[#allocation8 + $0x30] sm:$0xff]
    %v334 = vld [vmem:[#allocation8 + $0x38] sm:$0xff]
    %v335 = vld [vmem:[#allocation8 + $0x40] sm:$0xff]
    %v336 = vld [vmem:[#allocation8 + $0x48] sm:$0xff]
    %v337 = vld [vmem:[#allocation8 + $0x50] sm:$0xff]
    %v338 = vld [vmem:[#allocation8 + $0x58] sm:$0xff]
    %v339 = vld [vmem:[#allocation8 + $0x60] sm:$0xff]
    %v340 = vld [vmem:[#allocation8 + $0x68] sm:$0xff]
    %v341 = vld [vmem:[#allocation8 + $0x70] sm:$0xff]
    %v342 = vld [vmem:[#allocation8 + $0x78] sm:$0xff]
    %v343 = vld [vmem:[%s5] sm:$0x1]
    %v345 = vlaneseq
    %v346 = vshrl.u32 %v345, 7
    %v347 = vsub.s32 0, %v346
    %v348 = vrot.slane %v343, %v347
    %350 = vmatprep.subr.mxu0 0.0
    %351 = vmatpush1.msra.mxu0 %v327
    %352 = vmatprep.subr.mxu0 0.0
    %353 = vmatpush1.msra.mxu0 %v328
    %354 = vmatprep.subr.mxu0 0.0
    %355 = vmatpush1.msra.mxu0 %v329
    %356 = vmatprep.subr.mxu0 0.0
    %357 = vmatpush1.msra.mxu0 %v330
    %358 = vmatprep.subr.mxu0 0.0
    %359 = vmatpush1.msra.mxu0 %v331
    %360 = vmatprep.subr.mxu0 0.0
    %361 = vmatpush1.msra.mxu0 %v332
    %362 = vmatprep.subr.mxu0 0.0
    %363 = vmatpush1.msra.mxu0 %v333
    %364 = vmatprep.subr.mxu0 0.0
    %365 = vmatpush1.msra.mxu0 %v334
    %366 = vmatprep.subr.mxu0 0.0
    %367 = vmatpush1.msra.mxu0 %v335
    %368 = vmatprep.subr.mxu0 0.0
    %369 = vmatpush1.msra.mxu0 %v336
    %370 = vmatprep.subr.mxu0 0.0
    %371 = vmatpush1.msra.mxu0 %v337
    %372 = vmatprep.subr.mxu0 0.0
    %373 = vmatpush1.msra.mxu0 %v338
    %374 = vmatprep.subr.mxu0 0.0
    %375 = vmatpush1.msra.mxu0 %v339
    %376 = vmatprep.subr.mxu0 0.0
    %377 = vmatpush1.msra.mxu0 %v340
    %378 = vmatprep.subr.mxu0 0.0
    %379 = vmatpush1.msra.mxu0 %v341
    %380 = vmatprep.subr.mxu0 0.0
    %381 = vmatpush1.msra.mxu0 %v342
    %382 = vmatprep.subr.mxu0 0.0
    %383 = vmatpush1.msra.mxu0 0.0
    %384 = vmatprep.subr.mxu0 0.0
    %385 = vmatpush1.msra.mxu0 0.0
    %386 = vmatprep.subr.mxu0 0.0
    %387 = vmatpush1.msra.mxu0 0.0
    %388 = vmatprep.subr.mxu0 0.0
    %389 = vmatpush1.msra.mxu0 0.0
    %390 = vmatprep.subr.mxu0 0.0
    %391 = vmatpush1.msra.mxu0 0.0
    %392 = vmatprep.subr.mxu0 0.0
    %393 = vmatpush1.msra.mxu0 0.0
    %394 = vmatprep.subr.mxu0 0.0
    %395 = vmatpush1.msra.mxu0 0.0
    %396 = vmatprep.subr.mxu0 0.0
    %397 = vmatpush1.msra.mxu0 0.0
    %398 = vmatprep.subr.mxu0 0.0
    %399 = vmatpush1.msra.mxu0 0.0
    %400 = vmatprep.subr.mxu0 0.0
    %401 = vmatpush1.msra.mxu0 0.0
    %402 = vmatprep.subr.mxu0 0.0
    %403 = vmatpush1.msra.mxu0 0.0
    %404 = vmatprep.subr.mxu0 0.0
    %405 = vmatpush1.msra.mxu0 0.0
    %406 = vmatprep.subr.mxu0 0.0
    %407 = vmatpush1.msra.mxu0 0.0
    %408 = vmatprep.subr.mxu0 0.0
    %409 = vmatpush1.msra.mxu0 0.0
    %410 = vmatprep.subr.mxu0 0.0
    %411 = vmatpush1.msra.mxu0 0.0
    %412 = vmatprep.subr.mxu0 0.0
    %413 = vmatpush1.msra.mxu0 0.0
    %414 = vmatprep.mubr.f32.mxu0 0.0
    %415 = vmatmul.mubr.f32.gmra.mrb[0].mxu0 %v326
    %v416 = vpop.f32.mrb[0].mxu0
    %v417 = vadd.f32 %v348, %v416
    %v418 = vpop.f32.mrb[0].mxu0
    %419 = vdwg.mxu0
    %420 = vst [vmem:[#allocation10] sm:$0xff] %v417
    // Predicated region
    $region42: #{tpu_custom_call.1} parent=1 // pred_check
      _
    $region43: #{tpu_custom_call.1} parent=1 // pred_check_branch
      %422 = sbr.rel (0) target = $region45
    $region44: #{tpu_custom_call.1} parent=1 // pred_region
      %s424 = ssub.s32 128, 128
      %425 = vsyncadd [#allocation4], %s424
      %s427 = sshll.u32 [#allocation10], 4
      %s428 = int_to_ptr.vmem [resolvable:$true] %s427
      %430 = dma.vmem_to_hbm [thread:$0]  %s428, 128, %s6, [#allocation4]
    $region45: #{tpu_custom_call.1} parent=1 // pred_fallthru
      _
    // Predicated region
    $region46: #{tpu_custom_call.1} parent=1 // pred_check
      _
    $region47: #{tpu_custom_call.1} parent=1 // pred_check_branch
      %432 = sbr.rel (0) target = $region49
    $region48: #{tpu_custom_call.1} parent=1 // pred_region
      %433 = dma.done [#allocation4], 128
    $region49: #{tpu_custom_call.1} parent=1 // pred_fallthru
      _
    %434 = vsyncpa [#allocation3], 1
    %435 = vsyncpa [#allocation6], 1
    %436 = vsyncpa [#allocation9], 1
    %437 = vsyncpa [#allocation4], 1

</llo_original>
